<compile_context>
chip_gen: v6e
topology: v6e:2x2x1
jax: 0.10.0
libtpu: 0.0.40
codegen_flags: <defaults>
</compile_context>

<pallas_src>
import functools

import jax
import jax.numpy as jnp
from jax.experimental import pallas as pl
from jax.experimental.pallas import tpu as pltpu


_MAX_E_CHUNK = 256        # edge rows per MXU matmul / per store (256-wide MXU on v6e/v7x)
_VMEM_BUDGET = 40 << 20   # per-step working-set budget; leaves headroom on v7x (64 MiB)


def _round_up(x, m):
    return (x + m - 1) // m * m


def _gunpool_kernel(x_ref, s_ref, o_ref, *, n_verts, e_chunk, last_rows):
    # x_ref: VMEM (1, N, Ft)      — constant across the edge-chunk axis (not re-DMA'd)
    # s_ref: VMEM (e_chunk, N)    — precomputed selection-matrix chunk, streamed over HBM
    # o_ref: VMEM (1, N+E, Ft)    — resident across the edge-chunk axis
    e = pl.program_id(2)

    @pl.when(e == 0)
    def _():
        # Pass-through copy of the original vertices (once per (b, f) tile).
        o_ref[0, :n_verts, :] = x_ref[0]

    # Edge midpoints for this chunk on the MXU: (e_chunk, N) @ (N, Ft).
    mids = jnp.dot(s_ref[...], x_ref[0], preferred_element_type=jnp.float32)

    off = pl.multiple_of(e * e_chunk, e_chunk)
    if last_rows == e_chunk:
        o_ref[0, pl.ds(n_verts + off, e_chunk), :] = mids.astype(o_ref.dtype)
    else:
        n_e = pl.num_programs(2)

        @pl.when(e < n_e - 1)
        def _():
            o_ref[0, pl.ds(n_verts + off, e_chunk), :] = mids.astype(o_ref.dtype)

        @pl.when(e == n_e - 1)
        def _():
            o_ref[0, pl.ds(n_verts + off, last_rows), :] = (
                mids[:last_rows].astype(o_ref.dtype))


def _pick_f_tile(f_pad, n, n_out, e_chunk, x_bytes, s_bytes, batch):
    """Largest 128-multiple divisor of f_pad whose working set fits the VMEM budget;
    when B == 1 prefer >= 2 feature tiles so both v7x TensorCores get a grid point."""
    cands = [ft for ft in range(128, f_pad + 1, 128) if f_pad % ft == 0]
    cands.sort(reverse=True)

    def vmem_need(ft):
        return (2 * n * ft * x_bytes          # x tile, double-buffered
                + 2 * n_out * ft * x_bytes    # output tile, double-buffered
                + 2 * e_chunk * n * s_bytes   # S chunk, double-buffered
                + e_chunk * ft * 4)           # f32 matmul result

    fitting = [ft for ft in cands if vmem_need(ft) <= _VMEM_BUDGET] or [128]
    if batch == 1:
        multi = [ft for ft in fitting if f_pad // ft >= 2]
        if multi:
            return multi[0]
    return fitting[0]


def gunpooling(inputs: jax.Array, unpool_idx: jax.Array) -> jax.Array:
    """Pallas GUnpooling forward.

    inputs:     (B, N, F) float
    unpool_idx: (E, 2) int
    returns:    (B, N+E, F) float
    """
    B, N, F = inputs.shape
    E = unpool_idx.shape[0]

    x_bytes = inputs.dtype.itemsize
    s_dtype = jnp.bfloat16 if inputs.dtype == jnp.bfloat16 else jnp.float32

    # Edge chunking (multiple of 8 sublanes; 256 fills the v6e/v7x MXU M dimension).
    e_chunk = min(_MAX_E_CHUNK, _round_up(max(E, 1), 8))
    n_e_chunks = -(-E // e_chunk)
    e_pad = n_e_chunks * e_chunk
    last_rows = E - (n_e_chunks - 1) * e_chunk

    # Precomputed selection matrix: S[e, n] = 0.5*(n==idx0[e]) + 0.5*(n==idx1[e]).
    # Duplicate endpoints sum to 1.0, preserving 0.5*(v+v)=v.  0.0/0.5/1.0 are exact
    # in bf16, so S is built directly in the matmul dtype.
    # TODO(synk): clamping diverges from PyTorch, which raises on out-of-range indices.
    idx = jnp.clip(unpool_idx.astype(jnp.int32), 0, N - 1)
    cols = jnp.arange(N, dtype=jnp.int32)[None, :]                       # (1, N)
    sel = ((cols == idx[:, :1]).astype(s_dtype) +
           (cols == idx[:, 1:2]).astype(s_dtype)) * 0.5                  # (E, N)
    if e_pad != E:
        sel = jnp.pad(sel, ((0, e_pad - E), (0, 0)))                     # zero rows: unused

    # Pad F to a lane-dense multiple of 128 so all output stores are unmasked vst.
    f_pad = _round_up(F, 128)
    x = inputs if f_pad == F else jnp.pad(inputs, ((0, 0), (0, 0), (0, f_pad - F)))

    ft = _pick_f_tile(f_pad, N, N + E, e_chunk, x_bytes, sel.dtype.itemsize, B)
    n_f_tiles = f_pad // ft

    need = (2 * N * ft * x_bytes + 2 * (N + E) * ft * x_bytes
            + 2 * e_chunk * N * sel.dtype.itemsize + e_chunk * ft * 4)
    vmem_limit = int(min(max(need * 5 // 4 + (2 << 20), 32 << 20), 64 << 20))

    kernel = functools.partial(
        _gunpool_kernel, n_verts=N, e_chunk=e_chunk, last_rows=last_rows)

    out = pl.pallas_call(
        kernel,
        out_shape=jax.ShapeDtypeStruct((B, N + E, f_pad), inputs.dtype),
        grid=(B, n_f_tiles, n_e_chunks),
        in_specs=[
            pl.BlockSpec((1, N, ft), lambda b, f, e: (b, 0, f)),
            pl.BlockSpec((e_chunk, N), lambda b, f, e: (e, 0)),
        ],
        out_specs=pl.BlockSpec((1, N + E, ft), lambda b, f, e: (b, 0, f)),
        compiler_params=pltpu.CompilerParams(
            dimension_semantics=("parallel", "parallel", "arbitrary"),
            vmem_limit_bytes=vmem_limit),
    )(x, sel)

    if f_pad != F:
        out = out[..., :F]
    return out


def gunpooling_ref(inputs, unpool_idx):
    # Pure-JAX reference mirroring the PyTorch forward.
    new_features = inputs[:, unpool_idx]           # (B, E, 2, F)
    new_vertices = 0.5 * new_features.sum(axis=2)  # (B, E, F)
    return jnp.concatenate([inputs, new_vertices], axis=1)


if __name__ == "__main__":
    key = jax.random.PRNGKey(0)
    k_x, k_idx = jax.random.split(key)

    B, N, F, E = 2, 16, 32, 8
    x = jax.random.normal(k_x, (B, N, F), dtype=jnp.float32)
    unpool_idx = jax.random.randint(k_idx, (E, 2), 0, N, dtype=jnp.int32)

    out = jax.block_until_ready(gunpooling(x, unpool_idx))

    ref = gunpooling_ref(x, unpool_idx)
    assert out.shape == (B, N + E, F), out.shape
    assert jnp.allclose(out, ref, atol=1e-5, rtol=1e-5), "mismatch vs reference"

    print("KERNEL_OK")
</pallas_src>

<mosaic_0001>
module attributes {stable_mosaic.version = 11 : i64} {
  func.func @_gunpool_kernel(%arg0: i32, %arg1: i32, %arg2: i32, %arg3: memref<1x16x128xf32, #tpu.memory_space<vmem>>, %arg4: memref<8x16xf32, #tpu.memory_space<vmem>>, %arg5: memref<1x24x128xf32, #tpu.memory_space<vmem>>) attributes {dimension_semantics = [#tpu.dimension_semantics<parallel>, #tpu.dimension_semantics<parallel>, #tpu.dimension_semantics<arbitrary>], iteration_bounds = array<i64: 2, 1, 1>, scalar_prefetch = 0 : i64, scratch_operands = 0 : i64, tpu.core_type = #tpu.core_type<tc>, window_params = [{transform_indices = @transform_0, window_bounds = array<i64: 1, 16, 128>}, {transform_indices = @transform_1, window_bounds = array<i64: 8, 16>}, {transform_indices = @transform_2, window_bounds = array<i64: 1, 24, 128>}]} {
    %c0_i32 = arith.constant 0 : i32
    %0 = arith.cmpi eq, %arg2, %c0_i32 : i32
    %1 = arith.extui %0 : i1 to i32
    %c0_i32_0 = arith.constant 0 : i32
    %2 = arith.cmpi ne, %1, %c0_i32_0 : i32
    scf.if %2 {
      %c0_7 = arith.constant 0 : index
      %c0_8 = arith.constant 0 : index
      %c0_9 = arith.constant 0 : index
      %14 = vector.load %arg3[%c0_7, %c0_8, %c0_9] : memref<1x16x128xf32, #tpu.memory_space<vmem>>, vector<1x16x128xf32>
      %15 = vector.shape_cast %14 : vector<1x16x128xf32> to vector<16x128xf32>
      %c0_10 = arith.constant 0 : index
      %c0_11 = arith.constant 0 : index
      %c0_12 = arith.constant 0 : index
      %16 = vector.load %arg5[%c0_10, %c0_11, %c0_12] : memref<1x24x128xf32, #tpu.memory_space<vmem>>, vector<1x16x128xf32>
      %17 = vector.shape_cast %16 : vector<1x16x128xf32> to vector<16x128xf32>
      %18 = vector.shape_cast %15 : vector<16x128xf32> to vector<1x16x128xf32>
      tpu.vector_store %arg5[%c0_10, %c0_11, %c0_12], %18 {strides = array<i32>} : memref<1x24x128xf32, #tpu.memory_space<vmem>>, vector<1x16x128xf32>,
    } else {
    }
    %c0 = arith.constant 0 : index
    %c0_1 = arith.constant 0 : index
    %3 = vector.load %arg4[%c0, %c0_1] : memref<8x16xf32, #tpu.memory_space<vmem>>, vector<8x16xf32>
    %c0_2 = arith.constant 0 : index
    %c0_3 = arith.constant 0 : index
    %c0_4 = arith.constant 0 : index
    %4 = vector.load %arg3[%c0_2, %c0_3, %c0_4] : memref<1x16x128xf32, #tpu.memory_space<vmem>>, vector<1x16x128xf32>
    %5 = vector.shape_cast %4 : vector<1x16x128xf32> to vector<16x128xf32>
    %cst = arith.constant dense<0.000000e+00> : vector<8x128xf32>
    %6 = tpu.matmul %3, %5, %cst {dimension_numbers = #tpu.dot_dimension_numbers<[1], [0], [0], [1], [0, 0, 1, 1], [], []>} : vector<8x16xf32>, vector<16x128xf32>, vector<8x128xf32> -> vector<8x128xf32>
    %c8_i32 = arith.constant 8 : i32
    %7 = arith.muli %arg2, %c8_i32 : i32
    %8 = tpu.assume_multiple %7, 8 : i32
    %c16_i32 = arith.constant 16 : i32
    %9 = arith.addi %c16_i32, %8 : i32
    %c0_5 = arith.constant 0 : index
    %10 = arith.index_cast %9 : i32 to index
    %c0_6 = arith.constant 0 : index
    %11 = vector.load %arg5[%c0_5, %10, %c0_6] : memref<1x24x128xf32, #tpu.memory_space<vmem>>, vector<1x8x128xf32>
    %12 = vector.shape_cast %11 : vector<1x8x128xf32> to vector<8x128xf32>
    %13 = vector.shape_cast %6 : vector<8x128xf32> to vector<1x8x128xf32>
    tpu.vector_store %arg5[%c0_5, %10, %c0_6], %13 {strides = array<i32>} : memref<1x24x128xf32, #tpu.memory_space<vmem>>, vector<1x8x128xf32>,
    return
  }
  func.func @transform_0(%arg0: i32, %arg1: i32, %arg2: i32) -> (i32, i32, i32) {
    %c0_i32 = arith.constant 0 : i32
    %c0_i32_0 = arith.constant 0 : i32
    return %arg0, %c0_i32, %arg1 : i32, i32, i32
  }
  func.func @transform_1(%arg0: i32, %arg1: i32, %arg2: i32) -> (i32, i32) {
    %c0_i32 = arith.constant 0 : i32
    %c0_i32_0 = arith.constant 0 : i32
    return %arg2, %c0_i32 : i32, i32
  }
  func.func @transform_2(%arg0: i32, %arg1: i32, %arg2: i32) -> (i32, i32, i32) {
    %c0_i32 = arith.constant 0 : i32
    %c0_i32_0 = arith.constant 0 : i32
    return %arg0, %c0_i32, %arg1 : i32, i32, i32
  }
}

</mosaic_0001>

<llo_original>
// kernel: tpu_custom_call.1
$region0: #{tpu_custom_call.1}
  #allocation0 [shape = 'u32[]', space=smem, size = 0x4, offset = 0x4, fixed_abs, tag = 'smem constant byte address 0x4 - core index']
  #allocation1 [shape = 'u32[144,128]{1,0:T(1,128)}', space=vmem, size = 0x12000, scoped, tag = 'internal scratch']
  %s0 = inlined_call_operand.hbm [shape: f32[2,16,128], index: 0, kind: input, shape index: {}]
  %s1 = inlined_call_operand.hbm [shape: f32[8,16], index: 1, kind: input, shape index: {}]
  %s2 = inlined_call_operand.hbm [shape: f32[2,24,128], index: 2, kind: output, shape index: {}]
  %s3 = sld [smem:[#allocation0]]
  $region53: #{tpu_custom_call.1} parent=0
    _
  %s5 = ssub.s32 1, %s3
  %s6 = scalar_select 0, %s5, %s3
  $region1: #{tpu_custom_call.1} parent=0
    #allocation2 [shape = 'u8[16384]{0}', space=vmem, size = 0x4000, scoped, tag = 'input window, operand 0']
    #allocation3 [shape = 's32[2]{0}', space=sflag, size = 0x8, scoped, tag = 'scoped memory for tpu_custom_call.1']
    #allocation4 [shape = 's32[2]{0}', space=sflag, size = 0x8, scoped, tag = 'scoped memory for tpu_custom_call.1']
    #allocation5 [shape = 'u8[4096]{0}', space=vmem, size = 0x1000, scoped, tag = 'input window, operand 1, single buffered']
    #allocation6 [shape = 's32[1]{0}', space=sflag, size = 0x4, scoped, tag = 'scoped memory for tpu_custom_call.1']
    #allocation7 [shape = 'u8[24576]{0}', space=vmem, size = 0x6000, scoped, tag = 'output window, operand 0']
    %7 = vsyncpa [#allocation3], 0
    %s8 = scalar_lea.sflag [#allocation3], 1
    %9 = vsyncpa %s8, 0
    %10 = vsyncpa [#allocation6], 0
    %11 = vsyncpa [#allocation4], 0
    %s12 = scalar_lea.sflag [#allocation4], 1
    %13 = vsyncpa %s12, 0
    loop: start=0, step=1, limit=4
    $region2: #{tpu_custom_call.1} parent=1 // loop_pre_header
      _
    $region3: #{tpu_custom_call.1} parent=1 // loop_header
      %s15 = sphi 0, %s19
      %p16 = scmp.ge.s32.totalorder %s15, 4
      %s22 = sphi 0, %s41
      %s23 = sphi 0, %s37
      %s24 = sphi 0, %s33
      %s25 = sphi 0, %s22
      %s26 = sphi 0, %s23
      %s27 = sphi 0, %s24
      %s28 = sphi 0, %s25
      %s29 = sphi 0, %s26
      %s30 = sphi 0, %s27
      %s46 = sphi 0, %s48
      %s49 = sphi 0, %s46
      %s50 = sphi 0, %s49
      %s66 = sphi 0, %s50
      %s72 = sphi 0, %s74
      %s75 = sphi 0, %s72
      %s76 = sphi 0, %s75
      %s92 = sphi 0, %s76
      %s100 = sphi 0, %s102
      %s103 = sphi 0, %s100
      %s104 = sphi 0, %s103
      %s120 = sphi 0, %s104
    $region4: #{tpu_custom_call.1} parent=1 // loop_header_branch
      %18 = sbr.rel (%p16) target = $region8
    $region5: #{tpu_custom_call.1} parent=1 // loop_body
      %s20 = ssub.s32 %s15, 1
      %s21 = ssub.s32 %s15, 2
      %s31 = sadd.s32 1, %s24
      %p32 = scmp.ge.s32.totalorder %s31, 1
      %s33 = scalar_select %p32, 0, %s31
      %s34 = sadd.s32 1, %s23
      %s35 = scalar_select %p32, %s34, %s23
      %p36 = scmp.ge.s32.totalorder %s35, 1
      %s37 = scalar_select %p36, 0, %s35
      %s38 = sadd.s32 1, %s22
      %s39 = scalar_select %p36, %s38, %s22
      %p40 = scmp.ge.s32.totalorder %s39, 2
      %s41 = scalar_select %p40, 0, %s39
      %s42 = ssub.s32 %s22, %s41
      %s43 = ssub.s32 %s23, %s37
      %s44 = sor.u32 %s42, %s43
      %p45 = scmp.eq.s32.totalorder %s44, 0
      %s47 = sadd.s32 %s46, 1
      %s48 = scalar_select %p45, %s46, %s47
      %p51 = pneg %p45
      %p52 = scmp.eq.s32.totalorder %s15, 1
      %p53 = por %p51, %p52
      %p54 = scmp.ne.s32.totalorder %s46, %s49
      %p55 = scmp.eq.s32.totalorder %s15, 0
      %p56 = por %p54, %p55
      %p57 = scmp.ne.s32.totalorder %s46, %s49
      %p58 = scmp.eq.s32.totalorder %s20, 1
      %p59 = por %p57, %p58
      %p60 = scmp.ne.s32.totalorder %s49, %s50
      %p61 = scmp.eq.s32.totalorder %s20, 0
      %p62 = por %p60, %p61
      %p63 = scmp.ne.s32.totalorder %s49, %s50
      %p64 = scmp.eq.s32.totalorder %s21, 1
      %p65 = por %p63, %p64
      %p67 = scmp.ne.s32.totalorder %s50, %s66
      %p68 = scmp.eq.s32.totalorder %s21, 0
      %p69 = por %p67, %p68
      %s70 = ssub.s32 %s24, %s33
      %p71 = scmp.eq.s32.totalorder %s70, 0
      %s73 = sadd.s32 %s72, 1
      %s74 = scalar_select %p71, %s72, %s73
      %p77 = pneg %p71
      %p78 = scmp.eq.s32.totalorder %s15, 1
      %p79 = por %p77, %p78
      %p80 = scmp.ne.s32.totalorder %s72, %s75
      %p81 = scmp.eq.s32.totalorder %s15, 0
      %p82 = por %p80, %p81
      %p83 = scmp.ne.s32.totalorder %s72, %s75
      %p84 = scmp.eq.s32.totalorder %s20, 1
      %p85 = por %p83, %p84
      %p86 = scmp.ne.s32.totalorder %s75, %s76
      %p87 = scmp.eq.s32.totalorder %s20, 0
      %p88 = por %p86, %p87
      %p89 = scmp.ne.s32.totalorder %s75, %s76
      %p90 = scmp.eq.s32.totalorder %s21, 1
      %p91 = por %p89, %p90
      %p93 = scmp.ne.s32.totalorder %s76, %s92
      %p94 = scmp.eq.s32.totalorder %s21, 0
      %p95 = por %p93, %p94
      %s96 = ssub.s32 %s22, %s41
      %s97 = ssub.s32 %s23, %s37
      %s98 = sor.u32 %s96, %s97
      %p99 = scmp.eq.s32.totalorder %s98, 0
      %s101 = sadd.s32 %s100, 1
      %s102 = scalar_select %p99, %s100, %s101
      %p105 = pneg %p99
      %p106 = scmp.eq.s32.totalorder %s15, 1
      %p107 = por %p105, %p106
      %p108 = scmp.ne.s32.totalorder %s100, %s103
      %p109 = scmp.eq.s32.totalorder %s15, 0
      %p110 = por %p108, %p109
      %p111 = scmp.ne.s32.totalorder %s100, %s103
      %p112 = scmp.eq.s32.totalorder %s20, 1
      %p113 = por %p111, %p112
      %p114 = scmp.ne.s32.totalorder %s103, %s104
      %p115 = scmp.eq.s32.totalorder %s20, 0
      %p116 = por %p114, %p115
      %p117 = scmp.ne.s32.totalorder %s103, %s104
      %p118 = scmp.eq.s32.totalorder %s21, 1
      %p119 = por %p117, %p118
      %p121 = scmp.ne.s32.totalorder %s104, %s120
      %p122 = scmp.eq.s32.totalorder %s21, 0
      %p123 = por %p121, %p122
      %p124 = scmp.le.s32.totalorder 1, %s15
      %p125 = scmp.lt.s32.totalorder %s15, 3
      %p126 = pnand %p124, %p125
      %p127 = pneg %p126
      // Predicated region
      $region9: #{tpu_custom_call.1} parent=5 // pred_check
        _
      $region10: #{tpu_custom_call.1} parent=5 // pred_check_branch
        %129 = sbr.rel (%p126) target = $region12
      $region11: #{tpu_custom_call.1} parent=5 // pred_region
        %s130 = ssub.s32 %s15, 1
        // Predicated region
        $region13: #{tpu_custom_call.1} parent=11 // pred_check
          %p131 = pneg %p88
        $region14: #{tpu_custom_call.1} parent=11 // pred_check_branch
          %133 = sbr.rel (%p131) target = $region16
        $region15: #{tpu_custom_call.1} parent=11 // pred_region
          %s135 = ssub.s32 128, 128
          %136 = vsyncadd [#allocation6], %s135
          %s137 = smul.addr %s27, 128
          %s138 = scalar_lea.hbm %s1, %s137
          %s140 = sshll.u32 [#allocation5], 4
          %s141 = int_to_ptr.vmem [resolvable:$true] %s140
          %143 = dma.hbm_to_vmem [thread:$0]  %s138, 128, %s141, [#allocation6]
        $region16: #{tpu_custom_call.1} parent=11 // pred_fallthru
          _
      $region12: #{tpu_custom_call.1} parent=5 // pred_fallthru
        _
      %p144 = scmp.lt.s32.totalorder %s15, 2
      // Predicated region
      $region17: #{tpu_custom_call.1} parent=5 // pred_check
        %p145 = pneg %p144
      $region18: #{tpu_custom_call.1} parent=5 // pred_check_branch
        %147 = sbr.rel (%p145) target = $region20
      $region19: #{tpu_custom_call.1} parent=5 // pred_region
        // Predicated region
        $region21: #{tpu_custom_call.1} parent=19 // pred_check
          %p148 = pneg %p56
        $region22: #{tpu_custom_call.1} parent=19 // pred_check_branch
          %150 = sbr.rel (%p148) target = $region24
        $region23: #{tpu_custom_call.1} parent=19 // pred_region
          %s151 = sand.u32 %s46, 1
          %s152 = scalar_lea.sflag [#allocation3], %s151
          %s153 = sand.u32 %s46, 1
          %s154 = smul.addr %s153, 16
          %s155 = scalar_lea.vmem [#allocation2], %s154
          %s157 = ssub.s32 256, 256
          %158 = vsyncadd %s152, %s157
          %s159 = smul.addr %s22, 2
          %s160 = sadd.s32 %s23, %s159
          %s161 = smul.addr %s160, 128
          %s162 = scalar_lea.hbm %s0, %s161
          %s163 = sshll.u32 %s155, 4
          %s164 = int_to_ptr.vmem [resolvable:$true] %s163
          %169 = dma.hbm_to_vmem [thread:$0]  %s162, 256, %s164, %s152, 128, 128, 8
        $region24: #{tpu_custom_call.1} parent=19 // pred_fallthru
          _
      $region20: #{tpu_custom_call.1} parent=5 // pred_fallthru
        _
      %p170 = scmp.le.s32.totalorder 1, %s15
      %p171 = scmp.lt.s32.totalorder %s15, 3
      %p172 = pnand %p170, %p171
      %p173 = pneg %p172
      // Predicated region
      $region25: #{tpu_custom_call.1} parent=5 // pred_check
        _
      $region26: #{tpu_custom_call.1} parent=5 // pred_check_branch
        %175 = sbr.rel (%p172) target = $region28
      $region27: #{tpu_custom_call.1} parent=5 // pred_region
        %s176 = ssub.s32 %s15, 1
        %s177 = sand.u32 %s49, 1
        %s178 = scalar_lea.sflag [#allocation3], %s177
        %s179 = sand.u32 %s49, 1
        %s180 = smul.addr %s179, 16
        %s181 = scalar_lea.vmem [#allocation2], %s180
        // Predicated region
        $region29: #{tpu_custom_call.1} parent=27 // pred_check
          %p182 = pneg %p62
        $region30: #{tpu_custom_call.1} parent=27 // pred_check_branch
          %184 = sbr.rel (%p182) target = $region32
        $region31: #{tpu_custom_call.1} parent=27 // pred_region
          %185 = dma.done %s178, 256
        $region32: #{tpu_custom_call.1} parent=27 // pred_fallthru
          _
        // Predicated region
        $region33: #{tpu_custom_call.1} parent=27 // pred_check
          %p186 = pneg %p88
        $region34: #{tpu_custom_call.1} parent=27 // pred_check_branch
          %188 = sbr.rel (%p186) target = $region36
        $region35: #{tpu_custom_call.1} parent=27 // pred_region
          %189 = dma.done [#allocation6], 128
        $region36: #{tpu_custom_call.1} parent=27 // pred_fallthru
          _
        %s190 = sand.u32 %s49, 1
        %s191 = scalar_lea.sflag [#allocation3], %s190
        %s192 = sand.u32 %s49, 1
        %s193 = smul.addr %s192, 16
        %s194 = scalar_lea.vmem [#allocation2], %s193
        %p195 = pneg %p62
        %p196 = pneg %p59
        %p197 = pneg %p88
        %p198 = pneg %p85
        %p199 = pneg %p116
        %p200 = pneg %p113
        %s201 = sand.u32 %s103, 1
        %s202 = scalar_lea.sflag [#allocation4], %s201
        %s203 = sand.u32 %s103, 1
        %s204 = smul.addr %s203, 24
        %s205 = scalar_lea.vmem [#allocation7], %s204
        %p206 = scmp.eq.s32.totalorder %s27, 0
        // Predicated region
        $region37: #{tpu_custom_call.1} parent=27 // pred_check
          %p207 = pneg %p206
        $region38: #{tpu_custom_call.1} parent=27 // pred_check_branch
          %209 = sbr.rel (%p207) target = $region40
        $region39: #{tpu_custom_call.1} parent=27 // pred_region
          %v210 = vld [vmem:[%s181] sm:$0xff]
          %v211 = vld [vmem:[%s181 + $0x8] sm:$0xff]
          %212 = vst [vmem:[%s205] sm:$0xff] %v210
          %213 = vst [vmem:[%s205 + $0x8] sm:$0xff] %v211
        $region40: #{tpu_custom_call.1} parent=27 // pred_fallthru
          _
        %v214 = vld [vmem:[#allocation5] sm:$0xff]
        %v215 = vld [vmem:[%s181] sm:$0xff]
        %v216 = vld [vmem:[%s181 + $0x8] sm:$0xff]
        %vm217 = vcmask 130048
        %v219 = vsel %vm217, %v214, 0
        %221 = vmatprep.subr.mxu0 0.0
        %222 = vmatpush1.msra.mxu0 0.0
        %223 = vmatprep.subr.mxu0 0.0
        %224 = vmatpush1.msra.mxu0 0.0
        %225 = vmatprep.subr.mxu0 0.0
        %226 = vmatpush1.msra.mxu0 0.0
        %227 = vmatprep.subr.mxu0 0.0
        %228 = vmatpush1.msra.mxu0 0.0
        %229 = vmatprep.subr.mxu0 0.0
        %230 = vmatpush1.msra.mxu0 0.0
        %231 = vmatprep.subr.mxu0 0.0
        %232 = vmatpush1.msra.mxu0 0.0
        %233 = vmatprep.subr.mxu0 0.0
        %234 = vmatpush1.msra.mxu0 0.0
        %235 = vmatprep.subr.mxu0 0.0
        %236 = vmatpush1.msra.mxu0 0.0
        %237 = vmatprep.subr.mxu0 0.0
        %238 = vmatpush1.msra.mxu0 0.0
        %239 = vmatprep.subr.mxu0 0.0
        %240 = vmatpush1.msra.mxu0 0.0
        %241 = vmatprep.subr.mxu0 0.0
        %242 = vmatpush1.msra.mxu0 0.0
        %243 = vmatprep.subr.mxu0 0.0
        %244 = vmatpush1.msra.mxu0 0.0
        %245 = vmatprep.subr.mxu0 0.0
        %246 = vmatpush1.msra.mxu0 0.0
        %247 = vmatprep.subr.mxu0 0.0
        %248 = vmatpush1.msra.mxu0 0.0
        %249 = vmatprep.subr.mxu0 0.0
        %250 = vmatpush1.msra.mxu0 %v216
        %251 = vmatprep.subr.mxu0 0.0
        %252 = vmatpush1.msra.mxu0 %v215
        %253 = vmatprep.subr.mxu0 0.0
        %254 = vmatpush2.msra.mxu0 0.0
        %255 = vmatprep.subr.mxu0 0.0
        %256 = vmatpush2.msra.mxu0 0.0
        %257 = vmatprep.subr.mxu0 0.0
        %258 = vmatpush2.msra.mxu0 0.0
        %259 = vmatprep.subr.mxu0 0.0
        %260 = vmatpush2.msra.mxu0 0.0
        %261 = vmatprep.subr.mxu0 0.0
        %262 = vmatpush2.msra.mxu0 0.0
        %263 = vmatprep.subr.mxu0 0.0
        %264 = vmatpush2.msra.mxu0 0.0
        %265 = vmatprep.subr.mxu0 0.0
        %266 = vmatpush2.msra.mxu0 0.0
        %267 = vmatprep.subr.mxu0 0.0
        %268 = vmatpush2.msra.mxu0 0.0
        %269 = vmatprep.subr.mxu0 0.0
        %270 = vmatpush2.msra.mxu0 0.0
        %271 = vmatprep.subr.mxu0 0.0
        %272 = vmatpush2.msra.mxu0 0.0
        %273 = vmatprep.subr.mxu0 0.0
        %274 = vmatpush2.msra.mxu0 0.0
        %275 = vmatprep.subr.mxu0 0.0
        %276 = vmatpush2.msra.mxu0 0.0
        %277 = vmatprep.subr.mxu0 0.0
        %278 = vmatpush2.msra.mxu0 0.0
        %279 = vmatprep.subr.mxu0 0.0
        %280 = vmatpush2.msra.mxu0 0.0
        %281 = vmatprep.subr.mxu0 0.0
        %282 = vmatpush2.msra.mxu0 0.0
        %283 = vmatprep.subr.mxu0 0.0
        %284 = vmatpush2.msra.mxu0 0.0
        %285 = vmatprep.mubr.f32.mxu0 0.0
        %286 = vmatmul.mubr.f32.gmra.mxu0 %v219
        %v287 = vpop.f32.mrf.mxu0
        %v288 = vadd.f32 0.0, %v287
        %v289 = vpop.f32.mrf.mxu0
        %290 = vdwg.mxu0
        %s291 = smul.u32 %s27, 8
        %s292 = sadd.s32 %s291, 16
        %s293 = scalar_lea.vmem %s205, %s292 [#allocation7]
        %294 = vst [vmem:[%s293] sm:$0xff] %v288
        %s295 = sand.u32 %s103, 1
        %s296 = scalar_lea.sflag [#allocation4], %s295
        %s297 = sand.u32 %s103, 1
        %s298 = smul.addr %s297, 24
        %s299 = scalar_lea.vmem [#allocation7], %s298
        // Predicated region
        $region41: #{tpu_custom_call.1} parent=27 // pred_check
          %p300 = pneg %p113
        $region42: #{tpu_custom_call.1} parent=27 // pred_check_branch
          %302 = sbr.rel (%p300) target = $region44
        $region43: #{tpu_custom_call.1} parent=27 // pred_region
          %s304 = ssub.s32 384, 384
          %305 = vsyncadd %s296, %s304
          %s306 = smul.addr %s25, 3
          %s307 = sadd.s32 %s26, %s306
          %s308 = smul.addr %s307, 128
          %s309 = scalar_lea.hbm %s2, %s308
          %s310 = sshll.u32 %s299, 4
          %s311 = int_to_ptr.vmem [resolvable:$true] %s310
          %316 = dma.vmem_to_hbm [thread:$0]  %s311, 384, %s309, %s296, 128, 128, 8
        $region44: #{tpu_custom_call.1} parent=27 // pred_fallthru
          _
      $region28: #{tpu_custom_call.1} parent=5 // pred_fallthru
        _
      %p317 = scmp.le.s32.totalorder 2, %s15
      // Predicated region
      $region45: #{tpu_custom_call.1} parent=5 // pred_check
        %p318 = pneg %p317
      $region46: #{tpu_custom_call.1} parent=5 // pred_check_branch
        %320 = sbr.rel (%p318) target = $region48
      $region47: #{tpu_custom_call.1} parent=5 // pred_region
        %s321 = ssub.s32 %s15, 2
        // Predicated region
        $region49: #{tpu_custom_call.1} parent=47 // pred_check
          %p322 = pneg %p119
        $region50: #{tpu_custom_call.1} parent=47 // pred_check_branch
          %324 = sbr.rel (%p322) target = $region52
        $region51: #{tpu_custom_call.1} parent=47 // pred_region
          %s325 = sand.u32 %s104, 1
          %s326 = scalar_lea.sflag [#allocation4], %s325
          %s327 = sand.u32 %s104, 1
          %s328 = smul.addr %s327, 24
          %s329 = scalar_lea.vmem [#allocation7], %s328
          %330 = dma.done %s326, 384
        $region52: #{tpu_custom_call.1} parent=47 // pred_fallthru
          _
      $region48: #{tpu_custom_call.1} parent=5 // pred_fallthru
        _
    $region6: #{tpu_custom_call.1} parent=1 // loop_footer
      %s19 = sadd.s32 1, %s15
    $region7: #{tpu_custom_call.1} parent=1 // loop_footer_branch
      %14 = sbr.rel target = $region3
    $region8: #{tpu_custom_call.1} parent=1 // loop_exit
      _
    %331 = vsyncpa [#allocation3], 1
    %s332 = scalar_lea.sflag [#allocation3], 1
    %333 = vsyncpa %s332, 1
    %334 = vsyncpa [#allocation6], 1
    %335 = vsyncpa [#allocation4], 1
    %s336 = scalar_lea.sflag [#allocation4], 1
    %337 = vsyncpa %s336, 1

</llo_original>
